<compile_context>
chip_gen: v6e
topology: v6e:2x2x1
jax: 0.10.0
libtpu: 0.0.40
codegen_flags: <defaults>
</compile_context>

<pallas_src>
import functools

import jax
import jax.numpy as jnp
from jax import lax
from jax.experimental import pallas as pl
from jax.experimental.pallas import tpu as pltpu


def _round_up(x: int, m: int) -> int:
    return ((x + m - 1) // m) * m


def _vmem_budget_bytes() -> int:
    """Generation-aware usable-VMEM budget (bytes), with headroom."""
    cap = None
    try:
        cap = int(pltpu.get_tpu_info().vmem_capacity_bytes)
    except Exception:
        cap = None
    if not cap or cap <= 0:
        kind = ""
        try:
            kind = jax.devices()[0].device_kind.lower()
        except Exception:
            pass
        cap = (64 << 20) if "v7" in kind else (128 << 20)
    # ~75% of physical VMEM minus fixed headroom for compiler scratch:
    #   v7x (64 MiB)     -> ~46 MiB usable
    #   v5e/v6e (128 MiB)-> ~94 MiB usable
    return max(int(cap * 0.75) - (2 << 20), 8 << 20)


def _linear_gelu_kernel(x_ref, w_ref, b_ref, o_ref, *, compute_dtype,
                        approximate_gelu):
    # x_ref: (tm, D_in)   tile of the flattened (B*S, D_in) activations
    # w_ref: (D_in, N)    Linear weight tile (VMEM-resident / column block)
    # b_ref: (1, N)       Linear bias tile (f32)
    # o_ref: (tm, N)      output tile
    x = x_ref[...]
    if compute_dtype is not None and x.dtype != compute_dtype:
        # In-kernel cast: HBM bytes stay at the storage dtype while the MXU
        # runs at full bf16 rate; the VPU cast hides under the matmul.
        x = x.astype(compute_dtype)
    y = jnp.dot(x, w_ref[...], preferred_element_type=jnp.float32)
    y = y + b_ref[...]
    if approximate_gelu:
        # tanh-approx GELU: single EUP tanh — near-free epilogue when the
        # exact torch parity is not required.
        c = 0.7978845608028654  # sqrt(2/pi)
        y = 0.5 * y * (1.0 + jnp.tanh(c * (y + 0.044715 * y * y * y)))
    else:
        # exact (erf-based) GELU, matching torch.nn.GELU() default
        y = 0.5 * y * (1.0 + lax.erf(y * 0.7071067811865475))
    o_ref[...] = y.astype(o_ref.dtype)


def temporal_forward(x, w, b, *, compute_dtype=None, out_dtype=None,
                     approximate_gelu=False, _force_tn=None,
                     _budget_override=None):
    """Temporal(Sequential(Linear, GELU)).forward.

    x: (B, S, D_in), w: (D_in, D_out), b: (D_out,) -> (B, S, D_out).

    compute_dtype: e.g. jnp.bfloat16 to run the MXU at bf16 rate.  x is cast
    inside the kernel (no extra HBM pass); only w is cast in the wrapper.
    Accumulation, bias-add and GELU stay in f32.  Default None = exact f32.
    """
    B, S, D_in = x.shape
    D_out = w.shape[1]
    M = B * S
    out_dtype = x.dtype if out_dtype is None else jnp.dtype(out_dtype)
    if compute_dtype is not None:
        compute_dtype = jnp.dtype(compute_dtype)

    # Glue: the (B, S, *R) -> (B*S, *R) reshape Temporal.forward performs.
    x2 = x.reshape(M, D_in)

    # Weight/bias are small relative to activations: cast w once here (resident
    # in VMEM); keep x in its storage dtype and cast in-kernel.
    if compute_dtype is not None:
        w = w.astype(compute_dtype)
    b2 = b.astype(jnp.float32).reshape(1, D_out)

    x_item = jnp.dtype(x2.dtype).itemsize
    w_item = jnp.dtype(w.dtype).itemsize
    o_item = jnp.dtype(out_dtype).itemsize

    # Sublane packing of the M (second-to-last) axis: 8 rows for 32-bit tiles,
    # 16 for bf16, 32 for 1-byte storage dtypes.
    sub_m = max(8, 32 // min(x_item, o_item))

    budget = (_vmem_budget_bytes() if _budget_override is None
              else int(_budget_override))

    N_pad = _round_up(D_out, 128)
    # Whole weight (single-buffered) + bias must fit in <= half the budget to
    # stay resident; otherwise stream it in column blocks (path B).
    w_resident_bytes = D_in * N_pad * w_item + N_pad * 4
    use_n_tiling = (_force_tn is not None) or (w_resident_bytes > budget // 2)

    def fit_tm(avail, n_cols, in_bufs, out_bufs=2, cap=1024):
        per_row = in_bufs * D_in * x_item + out_bufs * n_cols * o_item
        t = max(avail, 0) // max(per_row, 1)
        t = (t // sub_m) * sub_m
        return max(sub_m, min(t, cap, _round_up(M, sub_m)))

    if not use_n_tiling:
        # ---- Path A: whole weight resident (single-buffered), 1-D grid on M.
        pad_frac = (N_pad - D_out) / D_out
        lane_pad = (D_out % 128 == 0) or (pad_frac <= 0.15)
        if lane_pad and N_pad != D_out:
            # Lane-dense output (unmasked vst); padded columns are GELU(0)=0.
            w = jnp.pad(w, ((0, 0), (0, N_pad - D_out)))
            b2 = jnp.pad(b2, ((0, 0), (0, N_pad - D_out)))
        # For large pad fractions (e.g. D_out=64 -> 128) a masked store is
        # cheaper than doubling writeback bytes + an un-fused slice pass.
        N = N_pad if lane_pad else D_out

        w_bytes = D_in * N * w_item + N * 4
        avail = budget - w_bytes - (1 << 20)
        tm = fit_tm(avail, N, in_bufs=2)
        x_mode = None
        if tm < 512 and pl.cdiv(M, tm) > 1:
            # Small tiles expose per-step DMA latency: 3-deep input buffering.
            tm = fit_tm(avail, N, in_bufs=3)
            x_mode = pl.Buffered(3)
        grid = (pl.cdiv(M, tm),)

        if x_mode is None:
            x_spec = pl.BlockSpec((tm, D_in), lambda i: (i, 0))
        else:
            x_spec = pl.BlockSpec((tm, D_in), lambda i: (i, 0),
                                  pipeline_mode=x_mode)
        in_specs = [
            x_spec,                                                 # streamed
            pl.BlockSpec((D_in, N), lambda i: (0, 0),
                         pipeline_mode=pl.Buffered(1)),             # resident w
            pl.BlockSpec((1, N), lambda i: (0, 0),
                         pipeline_mode=pl.Buffered(1)),             # resident b
        ]
        out_spec = pl.BlockSpec((tm, N), lambda i: (i, 0))
        dim_sem = ("parallel",)
        x_read_bytes = M * D_in * x_item
        vmem_need = (w_bytes
                     + (3 if x_mode is not None else 2) * tm * D_in * x_item
                     + 2 * tm * N * o_item)
    else:
        # ---- Path B: weight too large to sit whole in VMEM -> tile N.
        # grid = (N blocks, M blocks); N is the outer axis so each weight
        # column block is DMA'd exactly once and reused across every M tile
        # (x is re-read grid_n times, which is the cheaper direction).
        if N_pad != D_out:
            w = jnp.pad(w, ((0, 0), (0, N_pad - D_out)))
            b2 = jnp.pad(b2, ((0, 0), (0, N_pad - D_out)))
        N = N_pad
        if _force_tn is not None:
            tn = int(_force_tn)
        else:
            tn = int(budget * 0.4) // (2 * D_in * w_item)
            # Prefer 256-multiples (v6e/v7x 2x256x256 MXU); 128 as the floor.
            tn = (tn // 256) * 256 if tn >= 256 else 128
        tn = min(max(tn, 128), N)
        # TODO(synk): if even a (D_in, 128) double-buffered weight block does
        # not fit the budget, the contraction (D_in) axis would also need
        # tiling with a VMEM accumulator; not implemented here.

        avail = budget - 2 * D_in * tn * w_item - 2 * tn * 4 - (1 << 20)
        tm = fit_tm(avail, tn, in_bufs=2)
        grid = (pl.cdiv(N, tn), pl.cdiv(M, tm))

        in_specs = [
            pl.BlockSpec((tm, D_in), lambda j, i: (i, 0)),
            pl.BlockSpec((D_in, tn), lambda j, i: (0, j)),
            pl.BlockSpec((1, tn), lambda j, i: (0, j)),
        ]
        out_spec = pl.BlockSpec((tm, tn), lambda j, i: (i, j))
        dim_sem = ("parallel", "parallel")
        x_read_bytes = grid[0] * M * D_in * x_item
        vmem_need = (2 * D_in * tn * w_item + 2 * tn * 4
                     + 2 * tm * D_in * x_item + 2 * tm * tn * o_item)

    vmem_limit = int(min(max(int(vmem_need * 1.5) + (1 << 20), 8 << 20),
                         budget))

    cost = pl.CostEstimate(
        flops=2 * M * D_in * N,
        bytes_accessed=int(x_read_bytes + D_in * N * w_item + N * 4
                           + M * N * o_item),
        transcendentals=M * N,
    )

    kernel = functools.partial(_linear_gelu_kernel,
                               compute_dtype=compute_dtype,
                               approximate_gelu=approximate_gelu)

    out = pl.pallas_call(
        kernel,
        out_shape=jax.ShapeDtypeStruct((M, N), out_dtype),
        grid=grid,
        in_specs=in_specs,
        out_specs=out_spec,
        compiler_params=pltpu.CompilerParams(
            dimension_semantics=dim_sem,
            vmem_limit_bytes=vmem_limit,
        ),
        cost_estimate=cost,
    )(x2, w, b2)

    # Drop lane padding (if any), then reshape back to (B, S, *R_out).
    if N != D_out:
        out = out[:, :D_out]
    return out.reshape(B, S, D_out)


def _reference(x, w, b):
    B, S, D_in = x.shape
    y = x.reshape(B * S, D_in).astype(jnp.float32) @ w.astype(jnp.float32) + b
    y = 0.5 * y * (1.0 + lax.erf(y * 0.7071067811865475))
    return y.reshape(B, S, w.shape[1]).astype(x.dtype)


if __name__ == "__main__":
    key = jax.random.PRNGKey(0)
    kx, kw, kb, kx2, kw2, kb2 = jax.random.split(key, 6)

    # --- small shape consistent with the module (B, S, D_in) -> (B, S, D_out)
    B, S, D_in, D_out = 2, 8, 32, 64
    x = jax.random.normal(kx, (B, S, D_in), dtype=jnp.float32)
    w = jax.random.normal(kw, (D_in, D_out), dtype=jnp.float32) * (1.0 / jnp.sqrt(D_in))
    b = jax.random.normal(kb, (D_out,), dtype=jnp.float32) * 0.02

    out = jax.block_until_ready(temporal_forward(x, w, b))
    ref = _reference(x, w, b)
    assert out.shape == (B, S, D_out)
    assert jnp.allclose(out, ref, atol=1e-5, rtol=1e-5)

    # --- exercise the tiled M grid (multiple M tiles + ragged last block)
    B2, S2 = 3, 400  # M = 1200 -> tm = 1024 -> 2 grid steps with a ragged tail
    xl = jax.random.normal(kx2, (B2, S2, D_in), dtype=jnp.float32)
    out_l = jax.block_until_ready(temporal_forward(xl, w, b))
    ref_l = _reference(xl, w, b)
    assert out_l.shape == (B2, S2, D_out)
    assert jnp.allclose(out_l, ref_l, atol=1e-5, rtol=1e-5)

    # --- bf16 MXU path: x cast in-kernel, w cast once outside, f32 accum
    out_bf16 = jax.block_until_ready(
        temporal_forward(xl, w, b, compute_dtype=jnp.bfloat16))
    assert jnp.allclose(out_bf16, ref_l, atol=3e-2, rtol=3e-2)

    # --- N-tiled fallback path (weight column blocks streamed, 2-D grid)
    D_out2 = 256
    w2 = jax.random.normal(kw2, (D_in, D_out2), dtype=jnp.float32) * (1.0 / jnp.sqrt(D_in))
    b2v = jax.random.normal(kb2, (D_out2,), dtype=jnp.float32) * 0.02
    out_nt = jax.block_until_ready(temporal_forward(x, w2, b2v, _force_tn=128))
    ref_nt = _reference(x, w2, b2v)
    assert out_nt.shape == (B, S, D_out2)
    assert jnp.allclose(out_nt, ref_nt, atol=1e-5, rtol=1e-5)

    # --- tanh-approx GELU variant (EUP epilogue); looser tolerance vs exact
    out_tanh = jax.block_until_ready(
        temporal_forward(x, w, b, approximate_gelu=True))
    assert jnp.allclose(out_tanh, ref, atol=2e-2, rtol=2e-2)

    print("KERNEL_OK")
</pallas_src>

<mosaic_0001>
module attributes {stable_mosaic.version = 11 : i64} {
  func.func @_linear_gelu_kernel(%arg0: i32, %arg1: memref<16x32xf32, #tpu.memory_space<vmem>>, %arg2: memref<32x64xf32, #tpu.memory_space<vmem>>, %arg3: memref<1x64xf32, #tpu.memory_space<vmem>>, %arg4: memref<16x64xf32, #tpu.memory_space<vmem>>) attributes {dimension_semantics = [#tpu.dimension_semantics<parallel>], iteration_bounds = array<i64: 1>, scalar_prefetch = 0 : i64, scratch_operands = 0 : i64, tpu.core_type = #tpu.core_type<tc>, window_params = [{transform_indices = @transform_0, window_bounds = array<i64: 16, 32>}, {pipeline_mode = #tpu.pipeline_mode<synchronous>, transform_indices = @transform_1, window_bounds = array<i64: 32, 64>}, {pipeline_mode = #tpu.pipeline_mode<synchronous>, transform_indices = @transform_2, window_bounds = array<i64: 1, 64>}, {transform_indices = @transform_3, window_bounds = array<i64: 16, 64>}]} {
    %c0 = arith.constant 0 : index
    %c0_0 = arith.constant 0 : index
    %0 = vector.load %arg1[%c0, %c0_0] : memref<16x32xf32, #tpu.memory_space<vmem>>, vector<16x32xf32>
    %c0_1 = arith.constant 0 : index
    %c0_2 = arith.constant 0 : index
    %1 = vector.load %arg2[%c0_1, %c0_2] : memref<32x64xf32, #tpu.memory_space<vmem>>, vector<32x64xf32>
    %cst = arith.constant dense<0.000000e+00> : vector<16x64xf32>
    %2 = tpu.matmul %0, %1, %cst {dimension_numbers = #tpu.dot_dimension_numbers<[1], [0], [0], [1], [0, 0, 1, 1], [], []>} : vector<16x32xf32>, vector<32x64xf32>, vector<16x64xf32> -> vector<16x64xf32>
    %c0_3 = arith.constant 0 : index
    %c0_4 = arith.constant 0 : index
    %3 = vector.load %arg3[%c0_3, %c0_4] : memref<1x64xf32, #tpu.memory_space<vmem>>, vector<1x64xf32>
    %4 = vector.broadcast %3 : vector<1x64xf32> to vector<16x64xf32>
    %5 = arith.addf %2, %4 : vector<16x64xf32>
    %cst_5 = arith.constant 5.000000e-01 : f32
    %6 = vector.broadcast %cst_5 : f32 to vector<16x64xf32>
    %7 = arith.mulf %6, %5 : vector<16x64xf32>
    %cst_6 = arith.constant 0.707106769 : f32
    %8 = vector.broadcast %cst_6 : f32 to vector<16x64xf32>
    %9 = arith.mulf %5, %8 : vector<16x64xf32>
    %10 = math.erf %9 : vector<16x64xf32>
    %cst_7 = arith.constant 1.000000e+00 : f32
    %11 = vector.broadcast %cst_7 : f32 to vector<16x64xf32>
    %12 = arith.addf %11, %10 : vector<16x64xf32>
    %13 = arith.mulf %7, %12 : vector<16x64xf32>
    %c0_8 = arith.constant 0 : index
    %c0_9 = arith.constant 0 : index
    %14 = vector.load %arg4[%c0_8, %c0_9] : memref<16x64xf32, #tpu.memory_space<vmem>>, vector<16x64xf32>
    tpu.vector_store %arg4[%c0_8, %c0_9], %13 {strides = array<i32>} : memref<16x64xf32, #tpu.memory_space<vmem>>, vector<16x64xf32>,
    return
  }
  func.func @transform_0(%arg0: i32) -> (i32, i32) {
    %c0_i32 = arith.constant 0 : i32
    %c0_i32_0 = arith.constant 0 : i32
    return %arg0, %c0_i32 : i32, i32
  }
  func.func @transform_1(%arg0: i32) -> (i32, i32) {
    %c0_i32 = arith.constant 0 : i32
    %c0_i32_0 = arith.constant 0 : i32
    %c0_i32_1 = arith.constant 0 : i32
    return %c0_i32, %c0_i32_0 : i32, i32
  }
  func.func @transform_2(%arg0: i32) -> (i32, i32) {
    %c0_i32 = arith.constant 0 : i32
    %c0_i32_0 = arith.constant 0 : i32
    %c0_i32_1 = arith.constant 0 : i32
    return %c0_i32, %c0_i32_0 : i32, i32
  }
  func.func @transform_3(%arg0: i32) -> (i32, i32) {
    %c0_i32 = arith.constant 0 : i32
    %c0_i32_0 = arith.constant 0 : i32
    return %arg0, %c0_i32 : i32, i32
  }
}

</mosaic_0001>

<llo_original>
// kernel: tpu_custom_call.1
$region0: #{tpu_custom_call.1}
  #allocation0 [shape = 'u32[]', space=smem, size = 0x4, offset = 0x4, fixed_abs, tag = 'smem constant byte address 0x4 - core index']
  #allocation1 [shape = 'u32[144,128]{1,0:T(1,128)}', space=vmem, size = 0x12000, scoped, tag = 'internal scratch']
  %s0 = inlined_call_operand.hbm [shape: f32[16,32], index: 0, kind: input, shape index: {}]
  %s1 = inlined_call_operand.hbm [shape: f32[32,64], index: 1, kind: input, shape index: {}]
  %s2 = inlined_call_operand.vmem [shape: f32[1,64], index: 2, kind: input, shape index: {}]
  %s3 = inlined_call_operand.hbm [shape: f32[16,64], index: 3, kind: output, shape index: {}]
  %s4 = sld [smem:[#allocation0]]
  $region30: #{tpu_custom_call.1} parent=0
    _
  %s6 = ssub.s32 1, %s4
  %s7 = scalar_select 0, %s6, %s4
  $region1: #{tpu_custom_call.1} parent=0
    #allocation2 [shape = 'u8[8192]{0}', space=vmem, size = 0x2000, scoped, tag = 'input window, operand 0, single buffered']
    #allocation3 [shape = 's32[1]{0}', space=sflag, size = 0x4, scoped, tag = 'scoped memory for tpu_custom_call.1']
    #allocation4 [shape = 's32[1]{0}', space=sflag, size = 0x4, scoped, tag = 'scoped memory for tpu_custom_call.1']
    #allocation5 [shape = 'u8[16384]{0}', space=vmem, size = 0x4000, scoped, tag = 'input window, operand 1, single buffered']
    #allocation6 [shape = 's32[1]{0}', space=sflag, size = 0x4, scoped, tag = 'scoped memory for tpu_custom_call.1']
    #allocation7 [shape = 'u8[8192]{0}', space=vmem, size = 0x2000, scoped, tag = 'output window, operand 0, single buffered']
    %8 = vsyncpa [#allocation3], 0
    %9 = vsyncpa [#allocation6], 0
    %10 = vsyncpa [#allocation4], 0
    // Predicated region
    $region2: #{tpu_custom_call.1} parent=1 // pred_check
      _
    $region3: #{tpu_custom_call.1} parent=1 // pred_check_branch
      %12 = sbr.rel (0) target = $region5
    $region4: #{tpu_custom_call.1} parent=1 // pred_region
      %s14 = ssub.s32 256, 256
      %15 = vsyncadd [#allocation3], %s14
      %s16 = sshll.u32 [#allocation2], 4
      %s17 = int_to_ptr.vmem [resolvable:$true] %s16
      %22 = dma.hbm_to_vmem [thread:$0]  %s0, 256, %s17, [#allocation3], 128, 128, 8
    $region5: #{tpu_custom_call.1} parent=1 // pred_fallthru
      _
    // Predicated region
    $region6: #{tpu_custom_call.1} parent=1 // pred_check
      _
    $region7: #{tpu_custom_call.1} parent=1 // pred_check_branch
      %24 = sbr.rel (0) target = $region9
    $region8: #{tpu_custom_call.1} parent=1 // pred_region
      %s26 = ssub.s32 512, 512
      %27 = vsyncadd [#allocation6], %s26
      %s28 = sshll.u32 [#allocation5], 4
      %s29 = int_to_ptr.vmem [resolvable:$true] %s28
      %34 = dma.hbm_to_vmem [thread:$0]  %s1, 512, %s29, [#allocation6], 128, 128, 8
    $region9: #{tpu_custom_call.1} parent=1 // pred_fallthru
      _
    // Predicated region
    $region10: #{tpu_custom_call.1} parent=1 // pred_check
      _
    $region11: #{tpu_custom_call.1} parent=1 // pred_check_branch
      %36 = sbr.rel (0) target = $region13
    $region12: #{tpu_custom_call.1} parent=1 // pred_region
      _
    $region13: #{tpu_custom_call.1} parent=1 // pred_fallthru
      _
    // Predicated region
    $region14: #{tpu_custom_call.1} parent=1 // pred_check
      _
    $region15: #{tpu_custom_call.1} parent=1 // pred_check_branch
      %38 = sbr.rel (0) target = $region17
    $region16: #{tpu_custom_call.1} parent=1 // pred_region
      %39 = dma.done [#allocation3], 256
    $region17: #{tpu_custom_call.1} parent=1 // pred_fallthru
      _
    // Predicated region
    $region18: #{tpu_custom_call.1} parent=1 // pred_check
      _
    $region19: #{tpu_custom_call.1} parent=1 // pred_check_branch
      %41 = sbr.rel (0) target = $region21
    $region20: #{tpu_custom_call.1} parent=1 // pred_region
      %42 = dma.done [#allocation6], 512
    $region21: #{tpu_custom_call.1} parent=1 // pred_fallthru
      _
    %v43 = vld [vmem:[#allocation2] sm:$0xff]
    %v44 = vld [vmem:[#allocation2 + $0x8] sm:$0xff]
    %v45 = vld [vmem:[#allocation5] sm:$0xff]
    %v46 = vld [vmem:[#allocation5 + $0x8] sm:$0xff]
    %v47 = vld [vmem:[#allocation5 + $0x10] sm:$0xff]
    %v48 = vld [vmem:[#allocation5 + $0x18] sm:$0xff]
    %v49 = vld [vmem:[%s2] sm:$0x1]
    %v51 = vlaneseq
    %v52 = vshrl.u32 %v51, 7
    %v53 = vsub.s32 0, %v52
    %v54 = vrot.slane %v49, %v53
    %vm56 = vcmask 261120
    %v58 = vsel %vm56, %v43, 0
    %v61 = vsel %vm56, %v44, 0
    %63 = vmatprep.subr.mxu0 0.0
    %64 = vmatpush1.msra.mxu0 0.0
    %65 = vmatprep.subr.mxu0 0.0
    %66 = vmatpush1.msra.mxu0 0.0
    %67 = vmatprep.subr.mxu0 0.0
    %68 = vmatpush1.msra.mxu0 0.0
    %69 = vmatprep.subr.mxu0 0.0
    %70 = vmatpush1.msra.mxu0 0.0
    %71 = vmatprep.subr.mxu0 0.0
    %72 = vmatpush1.msra.mxu0 0.0
    %73 = vmatprep.subr.mxu0 0.0
    %74 = vmatpush1.msra.mxu0 0.0
    %75 = vmatprep.subr.mxu0 0.0
    %76 = vmatpush1.msra.mxu0 0.0
    %77 = vmatprep.subr.mxu0 0.0
    %78 = vmatpush1.msra.mxu0 0.0
    %79 = vmatprep.subr.mxu0 0.0
    %80 = vmatpush1.msra.mxu0 0.0
    %81 = vmatprep.subr.mxu0 0.0
    %82 = vmatpush1.msra.mxu0 0.0
    %83 = vmatprep.subr.mxu0 0.0
    %84 = vmatpush1.msra.mxu0 0.0
    %85 = vmatprep.subr.mxu0 0.0
    %86 = vmatpush1.msra.mxu0 0.0
    %87 = vmatprep.subr.mxu0 0.0
    %88 = vmatpush1.msra.mxu0 %v48
    %89 = vmatprep.subr.mxu0 0.0
    %90 = vmatpush1.msra.mxu0 %v47
    %91 = vmatprep.subr.mxu0 0.0
    %92 = vmatpush1.msra.mxu0 %v46
    %93 = vmatprep.subr.mxu0 0.0
    %94 = vmatpush1.msra.mxu0 %v45
    %95 = vmatprep.subr.mxu0 0.0
    %96 = vmatpush2.msra.mxu0 0.0
    %97 = vmatprep.subr.mxu0 0.0
    %98 = vmatpush2.msra.mxu0 0.0
    %99 = vmatprep.subr.mxu0 0.0
    %100 = vmatpush2.msra.mxu0 0.0
    %101 = vmatprep.subr.mxu0 0.0
    %102 = vmatpush2.msra.mxu0 0.0
    %103 = vmatprep.subr.mxu0 0.0
    %104 = vmatpush2.msra.mxu0 0.0
    %105 = vmatprep.subr.mxu0 0.0
    %106 = vmatpush2.msra.mxu0 0.0
    %107 = vmatprep.subr.mxu0 0.0
    %108 = vmatpush2.msra.mxu0 0.0
    %109 = vmatprep.subr.mxu0 0.0
    %110 = vmatpush2.msra.mxu0 0.0
    %111 = vmatprep.subr.mxu0 0.0
    %112 = vmatpush2.msra.mxu0 0.0
    %113 = vmatprep.subr.mxu0 0.0
    %114 = vmatpush2.msra.mxu0 0.0
    %115 = vmatprep.subr.mxu0 0.0
    %116 = vmatpush2.msra.mxu0 0.0
    %117 = vmatprep.subr.mxu0 0.0
    %118 = vmatpush2.msra.mxu0 0.0
    %119 = vmatprep.subr.mxu0 0.0
    %120 = vmatpush2.msra.mxu0 0.0
    %121 = vmatprep.subr.mxu0 0.0
    %122 = vmatpush2.msra.mxu0 0.0
    %123 = vmatprep.subr.mxu0 0.0
    %124 = vmatpush2.msra.mxu0 0.0
    %125 = vmatprep.subr.mxu0 0.0
    %126 = vmatpush2.msra.mxu0 0.0
    %127 = vmatprep.mubr.f32.mxu0 0.0
    %128 = vmatmul.mubr.f32.gmra.mxu0 %v58
    %v129 = vpop.f32.mrf.mxu0
    %v130 = vadd.f32 %v54, %v129
    %v131 = vpop.f32.mrf.mxu0
    %132 = vmatprep.mubr.f32.mxu0 0.0
    %133 = vmatmul.mubr.f32.gmra.mxu0 %v61
    %v134 = vpop.f32.mrf.mxu0
    %v135 = vadd.f32 %v54, %v134
    %v136 = vpop.f32.mrf.mxu0
    %137 = vdwg.mxu0
    %v138 = vmul.f32 %v130, 0.5
    %v139 = vmul.f32 %v135, 0.5
    %v140 = vmul.f32 %v130, 0.70710677
    %v141 = vmul.f32 %v135, 0.70710677
    %v142 = verf.f32.pop %v140
    %v143 = verf.f32.pop %v141
    %v144 = vadd.f32 %v142, 1.0
    %v145 = vadd.f32 %v143, 1.0
    %v146 = vmul.f32 %v138, %v144
    %v147 = vmul.f32 %v139, %v145
    %vm148 = vcmask 523264
    %149 = vst.msk [vmem:[#allocation7] sm:$0xff] %vm148, %v146
    %150 = vst.msk [vmem:[#allocation7 + $0x8] sm:$0xff] %vm148, %v147
    // Predicated region
    $region22: #{tpu_custom_call.1} parent=1 // pred_check
      _
    $region23: #{tpu_custom_call.1} parent=1 // pred_check_branch
      %152 = sbr.rel (0) target = $region25
    $region24: #{tpu_custom_call.1} parent=1 // pred_region
      %s154 = ssub.s32 256, 256
      %155 = vsyncadd [#allocation4], %s154
      %s156 = sshll.u32 [#allocation7], 4
      %s157 = int_to_ptr.vmem [resolvable:$true] %s156
      %162 = dma.vmem_to_hbm [thread:$0]  %s157, 256, %s3, [#allocation4], 128, 128, 8
    $region25: #{tpu_custom_call.1} parent=1 // pred_fallthru
      _
    // Predicated region
    $region26: #{tpu_custom_call.1} parent=1 // pred_check
      _
    $region27: #{tpu_custom_call.1} parent=1 // pred_check_branch
      %164 = sbr.rel (0) target = $region29
    $region28: #{tpu_custom_call.1} parent=1 // pred_region
      %165 = dma.done [#allocation4], 256
    $region29: #{tpu_custom_call.1} parent=1 // pred_fallthru
      _
    %166 = vsyncpa [#allocation3], 1
    %167 = vsyncpa [#allocation6], 1
    %168 = vsyncpa [#allocation4], 1

</llo_original>
